<compile_context>
chip_gen: v7x
topology: tpu7x:2x2x1
jax: 0.10.0
libtpu: 0.0.40
codegen_flags: <defaults>
</compile_context>

<pallas_src>
import random
import numpy as np

import jax
import jax.numpy as jnp
from jax.experimental import pallas as pl
from jax.experimental.pallas import tpu as pltpu

# ----------------------- deterministic transform params -----------------------
NUM_TRANSFORMS = 4
GAIN_DB = 6.0
GAIN_FACTOR = float(10.0 ** (GAIN_DB / 20.0))   # ~1.9953
DC_OFFSET = 0.1


# --------------------------------- kernel -------------------------------------
def some_of_kernel(mask_ref, x_ref, o_ref):
    """Apply the selected subset of elementwise waveform transforms.

    mask_ref: SMEM int32[NUM_TRANSFORMS] — 1 if transform i is selected.
    x_ref / o_ref: VMEM tiles of the flattened (rows, time) waveform.

    The transform chain (gain -> polarity -> tanh -> dc-offset, each optional)
    is folded into:  y = [tanh?](x * scale) + offset
    where scale/offset/do_tanh are scalars computed once per block.
    """
    one = jnp.float32(1.0)
    scale = jnp.where(mask_ref[0] > 0, jnp.float32(GAIN_FACTOR), one)
    scale = scale * jnp.where(mask_ref[1] > 0, jnp.float32(-1.0), one)
    offset = jnp.where(mask_ref[3] > 0, jnp.float32(DC_OFFSET), jnp.float32(0.0))
    do_tanh = mask_ref[2] > 0

    # Compute in f32 (matches the reference, which upcasts), cast back on store.
    x = x_ref[...].astype(jnp.float32)

    @pl.when(do_tanh)
    def _():
        o_ref[...] = (jnp.tanh(x * scale) + offset).astype(o_ref.dtype)

    @pl.when(jnp.logical_not(do_tanh))
    def _():
        o_ref[...] = (x * scale + offset).astype(o_ref.dtype)


def _round_up(x, m):
    return ((x + m - 1) // m) * m


def _sublane_granule(dtype):
    # Minimum sublane tile for the dtype (sub-32-bit dtypes pack along sublanes).
    return {4: 8, 2: 16, 1: 32}.get(jnp.dtype(dtype).itemsize, 8)


@jax.jit
def some_of_pallas(samples, mask):
    """samples: (B, C, T) waveform; mask: (NUM_TRANSFORMS,) int32."""
    B, C, T = samples.shape
    rows = B * C
    x2d = samples.reshape(rows, T)
    itemsize = x2d.dtype.itemsize
    granule = _sublane_granule(x2d.dtype)

    # Tile selection (static at trace time). ~4 MiB target / 6 MiB cap keeps
    # in+out double-buffering (<= 24 MiB) under the explicit 32 MiB VMEM limit
    # on every generation (v5e/v6e/v7x) while amortizing per-step overhead.
    TARGET_BLOCK_BYTES = 4 * 1024 * 1024
    MAX_BLOCK_BYTES = 6 * 1024 * 1024
    row_bytes = T * itemsize

    if T < 128 or granule * row_bytes <= MAX_BLOCK_BYTES:
        # Full-time (contiguous-row) blocks; grow row_tile toward the target.
        time_tile = T
        row_tile = max(
            granule, (TARGET_BLOCK_BYTES // max(row_bytes, 1)) // granule * granule
        )
        if rows < granule:
            row_tile = rows  # full extent (valid even if < sublane granule)
        else:
            row_tile = min(row_tile, _round_up(rows, granule))
    else:
        # Very long waveforms: tile the time axis in 128-multiples.
        row_tile = granule if rows >= granule else rows
        time_tile = max(
            128, (TARGET_BLOCK_BYTES // max(row_tile * itemsize, 1)) // 128 * 128
        )
        time_tile = min(time_tile, _round_up(T, 128))

    # Ensure >= 2 grid programs along a parallel axis when feasible so both
    # v7x TensorCores get work (no effect on v5e/v6e correctness or perf).
    if pl.cdiv(rows, row_tile) * pl.cdiv(T, time_tile) < 2:
        if rows >= 2 * granule:
            row_tile = _round_up(pl.cdiv(rows, 2), granule)
        elif T >= 256 and time_tile == T:
            time_tile = _round_up(pl.cdiv(T, 2), 128)

    grid = (pl.cdiv(rows, row_tile), pl.cdiv(T, time_tile))

    out2d = pl.pallas_call(
        some_of_kernel,
        out_shape=jax.ShapeDtypeStruct((rows, T), samples.dtype),
        grid_spec=pltpu.PrefetchScalarGridSpec(
            num_scalar_prefetch=1,
            grid=grid,
            in_specs=[
                pl.BlockSpec((row_tile, time_tile), lambda i, j, m: (i, j)),
            ],
            out_specs=pl.BlockSpec((row_tile, time_tile), lambda i, j, m: (i, j)),
        ),
        compiler_params=pltpu.CompilerParams(
            dimension_semantics=("parallel", "parallel"),
            vmem_limit_bytes=32 * 1024 * 1024,
        ),
    )(mask, x2d)

    return out2d.reshape(B, C, T)


# ------------------------------ SomeOf wrapper ---------------------------------
class SomeOfPallas:
    """Host-side composition logic mirroring torch SomeOf; compute in Pallas."""

    def __init__(self, num_transforms, n_total=NUM_TRANSFORMS, p=1.0):
        self.n_total = n_total
        if isinstance(num_transforms, tuple):
            self.min_num = num_transforms[0]
            self.max_num = num_transforms[1] if num_transforms[1] else n_total
        else:
            self.min_num = self.max_num = num_transforms
        assert 1 <= self.min_num <= n_total
        assert self.max_num <= n_total
        self.p = p
        self.transform_indexes = []
        self.are_parameters_frozen = False

    def freeze_parameters(self):
        self.are_parameters_frozen = True

    def unfreeze_parameters(self):
        self.are_parameters_frozen = False

    def randomize_parameters(self):
        k = random.randint(self.min_num, self.max_num)
        self.transform_indexes = sorted(random.sample(range(self.n_total), k))

    def __call__(self, samples, sample_rate=None):
        if random.random() < self.p:
            if not self.are_parameters_frozen:
                self.randomize_parameters()
            # Host-side (numpy) mask construction — no device-side scatter.
            mask_np = np.zeros((self.n_total,), dtype=np.int32)
            if self.transform_indexes:
                mask_np[np.asarray(self.transform_indexes, dtype=np.int64)] = 1
            mask = jnp.asarray(mask_np)
            return some_of_pallas(samples, mask)
        return samples


# ------------------------------ reference (plain JAX) ---------------------------
def reference_apply(samples, indexes):
    x = samples.astype(jnp.float32)
    for i in indexes:
        if i == 0:
            x = x * GAIN_FACTOR
        elif i == 1:
            x = -x
        elif i == 2:
            x = jnp.tanh(x)
        elif i == 3:
            x = x + DC_OFFSET
    return x


if __name__ == "__main__":
    random.seed(0)  # deterministic transform-subset selection

    key = jax.random.PRNGKey(0)
    B, C, T = 2, 4, 1024  # batch, channels, num_samples
    samples = jax.random.normal(key, (B, C, T), dtype=jnp.float32) * 0.5

    some_of = SomeOfPallas(num_transforms=(1, 3), p=1.0)
    out = some_of(samples)
    out = jax.block_until_ready(out)

    # correctness check against plain-JAX reference of the same selection
    ref = reference_apply(samples, some_of.transform_indexes)
    assert out.shape == samples.shape and out.dtype == samples.dtype
    assert jnp.allclose(out, ref, atol=1e-5, rtol=1e-5)

    # also exercise the all-transforms path (forces the tanh branch)
    some_of2 = SomeOfPallas(num_transforms=4, p=1.0)
    out2 = jax.block_until_ready(some_of2(samples))
    ref2 = reference_apply(samples, some_of2.transform_indexes)
    assert jnp.allclose(out2, ref2, atol=1e-5, rtol=1e-5)

    # exercise a non-divisible shape (ragged trailing blocks, no pad/slice path)
    B3, C3, T3 = 2, 3, 1000
    samples3 = jax.random.normal(jax.random.PRNGKey(1), (B3, C3, T3), jnp.float32) * 0.5
    some_of3 = SomeOfPallas(num_transforms=(1, 4), p=1.0)
    out3 = jax.block_until_ready(some_of3(samples3))
    ref3 = reference_apply(samples3, some_of3.transform_indexes)
    assert out3.shape == samples3.shape
    assert jnp.allclose(out3, ref3, atol=1e-5, rtol=1e-5)

    print("KERNEL_OK")
</pallas_src>

<mosaic_0001>
module attributes {stable_mosaic.version = 11 : i64} {
  func.func @some_of_kernel(%arg0: i32, %arg1: i32, %arg2: memref<4xi32, #tpu.memory_space<smem>>, %arg3: memref<8x512xf32, #tpu.memory_space<vmem>>, %arg4: memref<8x512xf32, #tpu.memory_space<vmem>>) attributes {dimension_semantics = [#tpu.dimension_semantics<parallel>, #tpu.dimension_semantics<parallel>], iteration_bounds = array<i64: 1, 2>, scalar_prefetch = 1 : i64, scratch_operands = 0 : i64, tpu.core_type = #tpu.core_type<tc>, window_params = [{transform_indices = @transform_0, window_bounds = array<i64: 8, 512>}, {transform_indices = @transform_1, window_bounds = array<i64: 8, 512>}]} {
    %c0 = arith.constant 0 : index
    %0 = memref.load %arg2[%c0] : memref<4xi32, #tpu.memory_space<smem>>
    %c0_i32 = arith.constant 0 : i32
    %1 = arith.cmpi sgt, %0, %c0_i32 : i32
    %cst = arith.constant 1.99526227 : f32
    %cst_0 = arith.constant 1.000000e+00 : f32
    %2 = arith.select %1, %cst, %cst_0 : f32
    %c1 = arith.constant 1 : index
    %3 = memref.load %arg2[%c1] : memref<4xi32, #tpu.memory_space<smem>>
    %c0_i32_1 = arith.constant 0 : i32
    %4 = arith.cmpi sgt, %3, %c0_i32_1 : i32
    %cst_2 = arith.constant -1.000000e+00 : f32
    %cst_3 = arith.constant 1.000000e+00 : f32
    %5 = arith.select %4, %cst_2, %cst_3 : f32
    %6 = arith.mulf %2, %5 : f32
    %c3 = arith.constant 3 : index
    %7 = memref.load %arg2[%c3] : memref<4xi32, #tpu.memory_space<smem>>
    %c0_i32_4 = arith.constant 0 : i32
    %8 = arith.cmpi sgt, %7, %c0_i32_4 : i32
    %cst_5 = arith.constant 1.000000e-01 : f32
    %cst_6 = arith.constant 0.000000e+00 : f32
    %9 = arith.select %8, %cst_5, %cst_6 : f32
    %c2 = arith.constant 2 : index
    %10 = memref.load %arg2[%c2] : memref<4xi32, #tpu.memory_space<smem>>
    %c0_i32_7 = arith.constant 0 : i32
    %11 = arith.cmpi sgt, %10, %c0_i32_7 : i32
    %c0_8 = arith.constant 0 : index
    %c0_9 = arith.constant 0 : index
    %12 = vector.load %arg3[%c0_8, %c0_9] : memref<8x512xf32, #tpu.memory_space<vmem>>, vector<8x512xf32>
    %13 = arith.extui %11 : i1 to i32
    %c0_i32_10 = arith.constant 0 : i32
    %14 = arith.cmpi ne, %13, %c0_i32_10 : i32
    scf.if %14 {
      %18 = vector.broadcast %6 : f32 to vector<8x512xf32>
      %19 = arith.mulf %12, %18 : vector<8x512xf32>
      %20 = math.tanh %19 : vector<8x512xf32>
      %21 = vector.broadcast %9 : f32 to vector<8x512xf32>
      %22 = arith.addf %20, %21 : vector<8x512xf32>
      %c0_12 = arith.constant 0 : index
      %c0_13 = arith.constant 0 : index
      %23 = vector.load %arg4[%c0_12, %c0_13] : memref<8x512xf32, #tpu.memory_space<vmem>>, vector<8x512xf32>
      tpu.vector_store %arg4[%c0_12, %c0_13], %22 {strides = array<i32>} : memref<8x512xf32, #tpu.memory_space<vmem>>, vector<8x512xf32>,
    } else {
    }
    %true = arith.constant true
    %15 = arith.xori %11, %true : i1
    %16 = arith.extui %15 : i1 to i32
    %c0_i32_11 = arith.constant 0 : i32
    %17 = arith.cmpi ne, %16, %c0_i32_11 : i32
    scf.if %17 {
      %18 = vector.broadcast %6 : f32 to vector<8x512xf32>
      %19 = arith.mulf %12, %18 : vector<8x512xf32>
      %20 = vector.broadcast %9 : f32 to vector<8x512xf32>
      %21 = arith.addf %19, %20 : vector<8x512xf32>
      %c0_12 = arith.constant 0 : index
      %c0_13 = arith.constant 0 : index
      %22 = vector.load %arg4[%c0_12, %c0_13] : memref<8x512xf32, #tpu.memory_space<vmem>>, vector<8x512xf32>
      tpu.vector_store %arg4[%c0_12, %c0_13], %21 {strides = array<i32>} : memref<8x512xf32, #tpu.memory_space<vmem>>, vector<8x512xf32>,
    } else {
    }
    return
  }
  func.func @transform_0(%arg0: i32, %arg1: i32, %arg2: memref<4xi32, #tpu.memory_space<smem>>) -> (i32, i32) {
    %c0_i32 = arith.constant 0 : i32
    return %arg0, %arg1 : i32, i32
  }
  func.func @transform_1(%arg0: i32, %arg1: i32, %arg2: memref<4xi32, #tpu.memory_space<smem>>) -> (i32, i32) {
    %c0_i32 = arith.constant 0 : i32
    return %arg0, %arg1 : i32, i32
  }
}

</mosaic_0001>

<llo_original>
// kernel: some_of_pallas.1
$region0: #{some_of_pallas.1}
  #allocation0 [shape = 'u32[]', space=smem, size = 0x4, offset = 0x4, fixed_abs, tag = 'smem constant byte address 0x4 - core index']
  #allocation1 [shape = 'u32[144,128]{1,0:T(1,128)}', space=vmem, size = 0x12000, scoped, tag = 'internal scratch']
  #allocation2 [shape = 's32[1]{0}', space=sflag, size = 0x4, scoped, tag = 'scoped memory for some_of_pallas.1']
  #allocation3 [shape = 'u8[512]{0}', space=smem, size = 0x200, scoped, tag = 'prefetched SMEM operand 0']
  %s0 = inlined_call_operand.vmem [shape: s32[4], index: 0, kind: input, shape index: {}]
  %s1 = inlined_call_operand.vmem [shape: f32[8,1024], index: 1, kind: input, shape index: {}]
  %s2 = inlined_call_operand.vmem [shape: f32[8,1024], index: 2, kind: output, shape index: {}]
  %s3 = sld [smem:[#allocation0]]
  $region45: #{some_of_pallas.1} parent=0
    _
  %s5 = ssub.s32 1, %s3
  %s6 = scalar_select 0, %s5, %s3
  %s7 = sshll.u32 %s0, 4
  %s8 = int_to_ptr.vmem [resolvable:$true] %s7
  %10 = dma.vmem_to_smem %s8, 16, [#allocation3], [#allocation2]
  %11 = dma.done [#allocation2], 16
  %12 = sfence
  loop: start=0, step=1, limit=4
  $region2: #{some_of_pallas.1} parent=0 // loop_pre_header
    _
  $region3: #{some_of_pallas.1} parent=0 // loop_header
    %s14 = sphi 0, %s18
    %p15 = scmp.ge.s32.totalorder %s14, 4
    %s21 = sphi 0, %s33
    %s22 = sphi 0, %s29
    %s23 = sphi 0, %s21
    %s24 = sphi 0, %s22
    %s25 = sphi 0, %s23
    %s26 = sphi 0, %s24
    %s38 = sphi 0, %s40
    %s41 = sphi 0, %s38
    %s42 = sphi 0, %s41
    %s58 = sphi 0, %s42
    %s66 = sphi 0, %s68
    %s69 = sphi 0, %s66
    %s70 = sphi 0, %s69
    %s86 = sphi 0, %s70
  $region4: #{some_of_pallas.1} parent=0 // loop_header_branch
    %17 = sbr.rel (%p15) target = $region8
  $region5: #{some_of_pallas.1} parent=0 // loop_body
    %s19 = ssub.s32 %s14, 1
    %s20 = ssub.s32 %s14, 2
    %s27 = sadd.s32 1, %s22
    %p28 = scmp.ge.s32.totalorder %s27, 2
    %s29 = scalar_select %p28, 0, %s27
    %s30 = sadd.s32 1, %s21
    %s31 = scalar_select %p28, %s30, %s21
    %p32 = scmp.ge.s32.totalorder %s31, 1
    %s33 = scalar_select %p32, 0, %s31
    %s34 = ssub.s32 %s21, %s33
    %s35 = ssub.s32 %s22, %s29
    %s36 = sor.u32 %s34, %s35
    %p37 = scmp.eq.s32.totalorder %s36, 0
    %s39 = sadd.s32 %s38, 1
    %s40 = scalar_select %p37, %s38, %s39
    %p43 = pneg %p37
    %p44 = scmp.eq.s32.totalorder %s14, 1
    %p45 = por %p43, %p44
    %p46 = scmp.ne.s32.totalorder %s38, %s41
    %p47 = scmp.eq.s32.totalorder %s14, 0
    %p48 = por %p46, %p47
    %p49 = scmp.ne.s32.totalorder %s38, %s41
    %p50 = scmp.eq.s32.totalorder %s19, 1
    %p51 = por %p49, %p50
    %p52 = scmp.ne.s32.totalorder %s41, %s42
    %p53 = scmp.eq.s32.totalorder %s19, 0
    %p54 = por %p52, %p53
    %p55 = scmp.ne.s32.totalorder %s41, %s42
    %p56 = scmp.eq.s32.totalorder %s20, 1
    %p57 = por %p55, %p56
    %p59 = scmp.ne.s32.totalorder %s42, %s58
    %p60 = scmp.eq.s32.totalorder %s20, 0
    %p61 = por %p59, %p60
    %s62 = ssub.s32 %s21, %s33
    %s63 = ssub.s32 %s22, %s29
    %s64 = sor.u32 %s62, %s63
    %p65 = scmp.eq.s32.totalorder %s64, 0
    %s67 = sadd.s32 %s66, 1
    %s68 = scalar_select %p65, %s66, %s67
    %p71 = pneg %p65
    %p72 = scmp.eq.s32.totalorder %s14, 1
    %p73 = por %p71, %p72
    %p74 = scmp.ne.s32.totalorder %s66, %s69
    %p75 = scmp.eq.s32.totalorder %s14, 0
    %p76 = por %p74, %p75
    %p77 = scmp.ne.s32.totalorder %s66, %s69
    %p78 = scmp.eq.s32.totalorder %s19, 1
    %p79 = por %p77, %p78
    %p80 = scmp.ne.s32.totalorder %s69, %s70
    %p81 = scmp.eq.s32.totalorder %s19, 0
    %p82 = por %p80, %p81
    %p83 = scmp.ne.s32.totalorder %s69, %s70
    %p84 = scmp.eq.s32.totalorder %s20, 1
    %p85 = por %p83, %p84
    %p87 = scmp.ne.s32.totalorder %s70, %s86
    %p88 = scmp.eq.s32.totalorder %s20, 0
    %p89 = por %p87, %p88
    %p90 = scmp.le.s32.totalorder 1, %s14
    %p91 = scmp.lt.s32.totalorder %s14, 3
    %p92 = pnand %p90, %p91
    %p93 = pneg %p92
    // Predicated region
    $region9: #{some_of_pallas.1} parent=5 // pred_check
      _
    $region10: #{some_of_pallas.1} parent=5 // pred_check_branch
      %95 = sbr.rel (%p92) target = $region12
    $region11: #{some_of_pallas.1} parent=5 // pred_region
      %s96 = ssub.s32 %s14, 1
    $region12: #{some_of_pallas.1} parent=5 // pred_fallthru
      _
    %p97 = scmp.lt.s32.totalorder %s14, 2
    // Predicated region
    $region13: #{some_of_pallas.1} parent=5 // pred_check
      %p98 = pneg %p97
    $region14: #{some_of_pallas.1} parent=5 // pred_check_branch
      %100 = sbr.rel (%p98) target = $region16
    $region15: #{some_of_pallas.1} parent=5 // pred_region
      // Predicated region
      $region17: #{some_of_pallas.1} parent=15 // pred_check
        %p101 = pneg %p48
      $region18: #{some_of_pallas.1} parent=15 // pred_check_branch
        %103 = sbr.rel (%p101) target = $region20
      $region19: #{some_of_pallas.1} parent=15 // pred_region
        %s104 = smul.u32 4, %s22
        %p105 = scmp.lt.s32.totalorder %s21, 0
        %s106 = scalar_select %p105, %s21, 0
        %p107 = scmp.lt.s32.totalorder %s104, 7
        %s108 = scalar_select %p107, %s104, 7
        %s109 = smul.addr %s106, 8
        %s110 = sadd.s32 %s108, %s109
        %s111 = smul.addr %s110, 8
        %s112 = scalar_lea.vmem %s1, %s111
        %s113 = smul.u32 4, %s22
      $region20: #{some_of_pallas.1} parent=15 // pred_fallthru
        _
    $region16: #{some_of_pallas.1} parent=5 // pred_fallthru
      _
    %p114 = scmp.le.s32.totalorder 1, %s14
    %p115 = scmp.lt.s32.totalorder %s14, 3
    %p116 = pnand %p114, %p115
    %p117 = pneg %p116
    // Predicated region
    $region21: #{some_of_pallas.1} parent=5 // pred_check
      _
    $region22: #{some_of_pallas.1} parent=5 // pred_check_branch
      %119 = sbr.rel (%p116) target = $region24
    $region23: #{some_of_pallas.1} parent=5 // pred_region
      %s120 = ssub.s32 %s14, 1
      %s121 = smul.u32 4, %s24
      %p122 = scmp.lt.s32.totalorder %s23, 0
      %s123 = scalar_select %p122, %s23, 0
      %p124 = scmp.lt.s32.totalorder %s121, 7
      %s125 = scalar_select %p124, %s121, 7
      %s126 = smul.addr %s123, 8
      %s127 = sadd.s32 %s125, %s126
      %s128 = smul.addr %s127, 8
      %s129 = scalar_lea.vmem %s1, %s128
      %p130 = pneg %p54
      %p131 = pneg %p51
      %p132 = pneg %p82
      %p133 = pneg %p79
      %s134 = smul.u32 4, %s24
      %p135 = scmp.lt.s32.totalorder %s23, 0
      %s136 = scalar_select %p135, %s23, 0
      %p137 = scmp.lt.s32.totalorder %s134, 7
      %s138 = scalar_select %p137, %s134, 7
      %s139 = smul.addr %s136, 8
      %s140 = sadd.s32 %s138, %s139
      %s141 = smul.addr %s140, 8
      %s142 = scalar_lea.vmem %s2, %s141
      %s143 = smul.u32 4, %s24
      %p144 = scmp.lt.s32.totalorder %s23, 0
      %s145 = scalar_select %p144, %s23, 0
      %p146 = scmp.lt.s32.totalorder %s143, 7
      %s147 = scalar_select %p146, %s143, 7
      %s148 = smul.addr %s145, 8
      %s149 = sadd.s32 %s147, %s148
      %s150 = smul.addr %s149, 8
      %s151 = scalar_lea.vmem %s1, %s150
      %s152 = smul.u32 4, %s24
      %s153 = smul.u32 4, %s24
      %p154 = scmp.lt.s32.totalorder %s23, 0
      %s155 = scalar_select %p154, %s23, 0
      %p156 = scmp.lt.s32.totalorder %s153, 7
      %s157 = scalar_select %p156, %s153, 7
      %s158 = smul.addr %s155, 8
      %s159 = sadd.s32 %s157, %s158
      %s160 = smul.addr %s159, 8
      %s161 = scalar_lea.vmem %s2, %s160
      %s162 = smul.u32 4, %s24
      %s163 = sld [smem:[#allocation3]]
      %p164 = scmp.gt.s32.totalorder %s163, 0
      %s165 = scalar_select %p164, 1.9952623, 1.0
      %s166 = sld [smem:[#allocation3 + $0x1]]
      %p167 = scmp.gt.s32.totalorder %s166, 0
      %s168 = scalar_select %p167, -1.0, 1.0
      %s169 = smul.f32 %s165, %s168
      %s170 = sld [smem:[#allocation3 + $0x3]]
      %p171 = scmp.gt.s32.totalorder %s170, 0
      %s172 = scalar_select %p171, 0.1, 0.0
      %s173 = sld [smem:[#allocation3 + $0x2]]
      %p174 = scmp.gt.s32.totalorder %s173, 0
      %v175 = vld [vmem:[%s151] sm:$0xff]
      %v176 = vld [vmem:[%s151 + $0x8] sm:$0xff]
      %v177 = vld [vmem:[%s151 + $0x10] sm:$0xff]
      %v178 = vld [vmem:[%s151 + $0x18] sm:$0xff]
      // Predicated region
      $region25: #{some_of_pallas.1} parent=23 // pred_check
        %p179 = pneg %p174
      $region26: #{some_of_pallas.1} parent=23 // pred_check_branch
        %181 = sbr.rel (%p179) target = $region28
      $region27: #{some_of_pallas.1} parent=23 // pred_region
        %v182 = vstv %s169
        %v183 = vmul.f32 %v175, %v182
        %v184 = vmul.f32 %v176, %v182
        %v185 = vmul.f32 %v177, %v182
        %v186 = vmul.f32 %v178, %v182
        %v187 = vtanh.pop %v183
        %v188 = vtanh.pop %v184
        %v189 = vtanh.pop %v185
        %v190 = vtanh.pop %v186
        %v191 = vstv %s172
        %v192 = vadd.f32 %v187, %v191
        %v193 = vadd.f32 %v188, %v191
        %v194 = vadd.f32 %v189, %v191
        %v195 = vadd.f32 %v190, %v191
        %196 = vst [vmem:[%s161] sm:$0xff] %v192
        %197 = vst [vmem:[%s161 + $0x8] sm:$0xff] %v193
        %198 = vst [vmem:[%s161 + $0x10] sm:$0xff] %v194
        %199 = vst [vmem:[%s161 + $0x18] sm:$0xff] %v195
      $region28: #{some_of_pallas.1} parent=23 // pred_fallthru
        _
      %p200 = scmp.le.s32.totalorder %s173, 0
      // Predicated region
      $region29: #{some_of_pallas.1} parent=23 // pred_check
        %p201 = pneg %p200
      $region30: #{some_of_pallas.1} parent=23 // pred_check_branch
        %203 = sbr.rel (%p201) target = $region32
      $region31: #{some_of_pallas.1} parent=23 // pred_region
        %v204 = vstv %s169
        %v205 = vmul.f32 %v175, %v204
        %v206 = vmul.f32 %v176, %v204
        %v207 = vmul.f32 %v177, %v204
        %v208 = vmul.f32 %v178, %v204
        %v209 = vstv %s172
        %v210 = vadd.f32 %v205, %v209
        %v211 = vadd.f32 %v206, %v209
        %v212 = vadd.f32 %v207, %v209
        %v213 = vadd.f32 %v208, %v209
        %214 = vst [vmem:[%s161] sm:$0xff] %v210
        %215 = vst [vmem:[%s161 + $0x8] sm:$0xff] %v211
        %216 = vst [vmem:[%s161 + $0x10] sm:$0xff] %v212
        %217 = vst [vmem:[%s161 + $0x18] sm:$0xff] %v213
      $region32: #{some_of_pallas.1} parent=23 // pred_fallthru
        _
      %s218 = smul.u32 4, %s24
      %p219 = scmp.lt.s32.totalorder %s23, 0
      %s220 = scalar_select %p219, %s23, 0
      %p221 = scmp.lt.s32.totalorder %s218, 7
      %s222 = scalar_select %p221, %s218, 7
      %s223 = smul.addr %s220, 8
      %s224 = sadd.s32 %s222, %s223
      %s225 = smul.addr %s224, 8
      %s226 = scalar_lea.vmem %s2, %s225
      // Predicated region
      $region33: #{some_of_pallas.1} parent=23 // pred_check
        %p227 = pneg %p79
      $region34: #{some_of_pallas.1} parent=23 // pred_check_branch
        %229 = sbr.rel (%p227) target = $region36
      $region35: #{some_of_pallas.1} parent=23 // pred_region
        %s230 = smul.u32 4, %s24
      $region36: #{some_of_pallas.1} parent=23 // pred_fallthru
        _
    $region24: #{some_of_pallas.1} parent=5 // pred_fallthru
      _
    %p231 = scmp.le.s32.totalorder 2, %s14
    // Predicated region
    $region37: #{some_of_pallas.1} parent=5 // pred_check
      %p232 = pneg %p231
    $region38: #{some_of_pallas.1} parent=5 // pred_check_branch
      %234 = sbr.rel (%p232) target = $region40
    $region39: #{some_of_pallas.1} parent=5 // pred_region
      %s235 = ssub.s32 %s14, 2
      // Predicated region
      $region41: #{some_of_pallas.1} parent=39 // pred_check
        %p236 = pneg %p85
      $region42: #{some_of_pallas.1} parent=39 // pred_check_branch
        %238 = sbr.rel (%p236) target = $region44
      $region43: #{some_of_pallas.1} parent=39 // pred_region
        %s239 = smul.u32 4, %s26
        %p240 = scmp.lt.s32.totalorder %s25, 0
        %s241 = scalar_select %p240, %s25, 0
        %p242 = scmp.lt.s32.totalorder %s239, 7
        %s243 = scalar_select %p242, %s239, 7
        %s244 = smul.addr %s241, 8
        %s245 = sadd.s32 %s243, %s244
        %s246 = smul.addr %s245, 8
        %s247 = scalar_lea.vmem %s2, %s246
      $region44: #{some_of_pallas.1} parent=39 // pred_fallthru
        _
    $region40: #{some_of_pallas.1} parent=5 // pred_fallthru
      _
  $region6: #{some_of_pallas.1} parent=0 // loop_footer
    %s18 = sadd.s32 1, %s14
  $region7: #{some_of_pallas.1} parent=0 // loop_footer_branch
    %13 = sbr.rel target = $region3
  $region8: #{some_of_pallas.1} parent=0 // loop_exit
    _

</llo_original>
